<compile_context>
chip_gen: v5e
topology: v5e:2x2
jax: 0.10.0
libtpu: 0.0.40
codegen_flags: <defaults>
</compile_context>

<pallas_src>
import jax
import jax.numpy as jnp
from jax.experimental import pallas as pl
from jax.experimental.pallas import tpu as pltpu


# --------------------------------- kernel ------------------------------------

def _cf_kernel(uid_ref, iid_ref,     # id tiles, each (1, BT) int32           (VMEM)
               ut_ref, it_ref,       # transposed tables (H, U_pad)/(H, I_pad) (VMEM, resident)
               w_ref,                # fc weight as column (H, 1)              (VMEM, resident)
               b_ref,                # fc bias (1, 1)                          (SMEM)
               o_ref):               # output tile (1, BT)                     (VMEM)
    uids = uid_ref[...]                                   # (1, BT) int32
    iids = iid_ref[...]                                   # (1, BT) int32
    bt = uids.shape[-1]
    n_u = ut_ref.shape[-1]
    n_i = it_ref.shape[-1]

    # In-kernel gather: one-hot selection matrices, batch on lanes.
    u_oh = (jax.lax.broadcasted_iota(jnp.int32, (n_u, bt), 0) == uids).astype(jnp.float32)
    i_oh = (jax.lax.broadcasted_iota(jnp.int32, (n_i, bt), 0) == iids).astype(jnp.float32)

    # MXU gathers: (H, V) @ (V, BT) -> (H, BT)
    u_emb = jnp.dot(ut_ref[...], u_oh, preferred_element_type=jnp.float32)
    i_emb = jnp.dot(it_ref[...], i_oh, preferred_element_type=jnp.float32)

    # Fused elementwise product with the fc weight (broadcast along lanes),
    # then a sublane reduction over H -> lane-dense (1, BT) result.
    combined = u_emb * i_emb * w_ref[...]                 # (H, BT)
    o_ref[...] = jnp.sum(combined, axis=0, keepdims=True) + b_ref[0, 0]


# -------------------------------- wrapper -------------------------------------

def cf_forward(params, user_ids, item_ids):
    """Fused CFModel forward: logits [B, 1]."""
    B = int(user_ids.shape[0])
    u_tbl = params['user_emb']          # (n_users, H) f32
    i_tbl = params['item_emb']          # (n_items, H) f32
    w = params['fc_w']                  # (1, H) f32
    b = params['fc_b']                  # (1, 1) f32
    H = u_tbl.shape[1]

    # --- batch tiling: BT rows per grid step, batch mapped to lanes ----------
    BT = 128
    num_tiles = (B + BT - 1) // BT
    B_pad = num_tiles * BT

    def pad_vocab_rows(tbl):
        v = tbl.shape[0]
        v_pad = ((v + 127) // 128) * 128          # lane-align vocab (zero rows)
        return jnp.pad(tbl, ((0, v_pad - v), (0, 0)))

    # Tables transposed so hidden is on sublanes, vocab on lanes; VMEM-resident.
    u_tbl_t = pad_vocab_rows(u_tbl).T             # (H, U_pad)
    i_tbl_t = pad_vocab_rows(i_tbl).T             # (H, I_pad)
    w_col = w.T                                   # (H, 1)
    U_pad = u_tbl_t.shape[1]
    I_pad = i_tbl_t.shape[1]

    uid3d = jnp.pad(user_ids.astype(jnp.int32), (0, B_pad - B)).reshape(num_tiles, 1, BT)
    iid3d = jnp.pad(item_ids.astype(jnp.int32), (0, B_pad - B)).reshape(num_tiles, 1, BT)

    # --- explicit VMEM budget from the working set (headroom for v7x 64 MiB) --
    resident_bytes = (u_tbl_t.size + i_tbl_t.size + w_col.size) * 4
    per_tile_bytes = 3 * BT * 4                   # two id tiles in + one out tile
    vmem_limit = int(min(max(2 * resident_bytes + 4 * per_tile_bytes + (2 << 20),
                             8 << 20),
                         48 << 20))

    out = pl.pallas_call(
        _cf_kernel,
        out_shape=jax.ShapeDtypeStruct((num_tiles, 1, BT), jnp.float32),
        grid=(num_tiles,),
        in_specs=[
            pl.BlockSpec((None, 1, BT), lambda t: (t, 0, 0)),      # user ids tile
            pl.BlockSpec((None, 1, BT), lambda t: (t, 0, 0)),      # item ids tile
            pl.BlockSpec((H, U_pad), lambda t: (0, 0)),            # user table (resident)
            pl.BlockSpec((H, I_pad), lambda t: (0, 0)),            # item table (resident)
            pl.BlockSpec((H, 1), lambda t: (0, 0)),                # fc weight  (resident)
            pl.BlockSpec(memory_space=pltpu.MemorySpace.SMEM),     # fc bias scalar
        ],
        out_specs=pl.BlockSpec((None, 1, BT), lambda t: (t, 0, 0)),  # lane-dense out tile
        compiler_params=pltpu.CompilerParams(
            dimension_semantics=("parallel",),        # batch tiles shard across TCs (v7x)
            vmem_limit_bytes=vmem_limit,
        ),
    )(uid3d, iid3d, u_tbl_t, i_tbl_t, w_col, b)

    return out.reshape(B_pad, 1)[:B]


# ------------------------------ parameters ------------------------------------

def init_params(key, n_users, n_items, hidden_size=64):
    k1, k2, k3, k4 = jax.random.split(key, 4)
    return {
        'user_emb': jax.random.normal(k1, (n_users, hidden_size), jnp.float32),
        'item_emb': jax.random.normal(k2, (n_items, hidden_size), jnp.float32),
        # nn.Linear(hidden_size, 1): weight [1, H], bias [1] (stored [1, 1])
        'fc_w': 0.1 * jax.random.normal(k3, (1, hidden_size), jnp.float32),
        'fc_b': 0.1 * jax.random.normal(k4, (1, 1), jnp.float32),
    }


# ---------------------------- pure-JAX reference -------------------------------

def cf_reference(params, user_ids, item_ids):
    u = params['user_emb'][user_ids]        # [B, H]
    it = params['item_emb'][item_ids]       # [B, H]
    combined = u * it
    return combined @ params['fc_w'].T + params['fc_b']   # [B, 1]


# ---------------------------------- main ---------------------------------------

if __name__ == "__main__":
    n_users, n_items = 100, 200     # small synthetic vocab (ml-100k would be 944 / 1683)
    hidden_size = 64                # module default
    B = 8

    key = jax.random.PRNGKey(0)
    pkey, ukey, ikey = jax.random.split(key, 3)
    params = init_params(pkey, n_users, n_items, hidden_size)
    user_ids = jax.random.randint(ukey, (B,), 0, n_users, dtype=jnp.int32)
    item_ids = jax.random.randint(ikey, (B,), 0, n_items, dtype=jnp.int32)

    out = cf_forward(params, user_ids, item_ids)
    out = jax.block_until_ready(out)

    ref = cf_reference(params, user_ids, item_ids)
    assert out.shape == (B, 1), out.shape
    assert bool(jnp.allclose(out, ref, atol=1e-4, rtol=1e-4)), (
        float(jnp.max(jnp.abs(out - ref))))

    print("KERNEL_OK")
</pallas_src>

<mosaic_0001>
module attributes {stable_mosaic.version = 11 : i64} {
  func.func @_cf_kernel(%arg0: i32, %arg1: memref<1x1x128xi32, #tpu.memory_space<vmem>>, %arg2: memref<1x1x128xi32, #tpu.memory_space<vmem>>, %arg3: memref<64x128xf32, #tpu.memory_space<vmem>>, %arg4: memref<64x256xf32, #tpu.memory_space<vmem>>, %arg5: memref<64x1xf32, #tpu.memory_space<vmem>>, %arg6: memref<1x1xf32, #tpu.memory_space<smem>>, %arg7: memref<1x1x128xf32, #tpu.memory_space<vmem>>) attributes {dimension_semantics = [#tpu.dimension_semantics<parallel>], iteration_bounds = array<i64: 1>, scalar_prefetch = 0 : i64, scratch_operands = 0 : i64, tpu.core_type = #tpu.core_type<tc>, window_params = [{transform_indices = @transform_0, window_bounds = array<i64: 1, 1, 128>}, {transform_indices = @transform_1, window_bounds = array<i64: 1, 1, 128>}, {pipeline_mode = #tpu.pipeline_mode<synchronous>, transform_indices = @transform_2, window_bounds = array<i64: 64, 128>}, {pipeline_mode = #tpu.pipeline_mode<synchronous>, transform_indices = @transform_3, window_bounds = array<i64: 64, 256>}, {pipeline_mode = #tpu.pipeline_mode<synchronous>, transform_indices = @transform_4, window_bounds = array<i64: 64, 1>}, {transform_indices = @transform_5, window_bounds = array<i64: 1, 1>}, {transform_indices = @transform_6, window_bounds = array<i64: 1, 1, 128>}]} {
    %c0 = arith.constant 0 : index
    %c0_0 = arith.constant 0 : index
    %c0_1 = arith.constant 0 : index
    %0 = vector.load %arg1[%c0, %c0_0, %c0_1] : memref<1x1x128xi32, #tpu.memory_space<vmem>>, vector<1x1x128xi32>
    %1 = vector.shape_cast %0 : vector<1x1x128xi32> to vector<1x128xi32>
    %c0_2 = arith.constant 0 : index
    %c0_3 = arith.constant 0 : index
    %c0_4 = arith.constant 0 : index
    %2 = vector.load %arg2[%c0_2, %c0_3, %c0_4] : memref<1x1x128xi32, #tpu.memory_space<vmem>>, vector<1x1x128xi32>
    %3 = vector.shape_cast %2 : vector<1x1x128xi32> to vector<1x128xi32>
    %4 = tpu.iota {dimensions = array<i32: 0>} : vector<128x128xi32>
    %5 = vector.broadcast %1 : vector<1x128xi32> to vector<128x128xi32>
    %6 = arith.cmpi eq, %4, %5 : vector<128x128xi32>
    %7 = arith.extui %6 : vector<128x128xi1> to vector<128x128xi32>
    %8 = arith.sitofp %7 : vector<128x128xi32> to vector<128x128xf32>
    %9 = tpu.iota {dimensions = array<i32: 0>} : vector<256x128xi32>
    %10 = vector.broadcast %3 : vector<1x128xi32> to vector<256x128xi32>
    %11 = arith.cmpi eq, %9, %10 : vector<256x128xi32>
    %12 = arith.extui %11 : vector<256x128xi1> to vector<256x128xi32>
    %13 = arith.sitofp %12 : vector<256x128xi32> to vector<256x128xf32>
    %c0_5 = arith.constant 0 : index
    %c0_6 = arith.constant 0 : index
    %14 = vector.load %arg3[%c0_5, %c0_6] : memref<64x128xf32, #tpu.memory_space<vmem>>, vector<64x128xf32>
    %cst = arith.constant dense<0.000000e+00> : vector<64x128xf32>
    %15 = tpu.matmul %14, %8, %cst {dimension_numbers = #tpu.dot_dimension_numbers<[1], [0], [0], [1], [0, 0, 1, 1], [], []>} : vector<64x128xf32>, vector<128x128xf32>, vector<64x128xf32> -> vector<64x128xf32>
    %c0_7 = arith.constant 0 : index
    %c0_8 = arith.constant 0 : index
    %16 = vector.load %arg4[%c0_7, %c0_8] : memref<64x256xf32, #tpu.memory_space<vmem>>, vector<64x256xf32>
    %cst_9 = arith.constant dense<0.000000e+00> : vector<64x128xf32>
    %17 = tpu.matmul %16, %13, %cst_9 {dimension_numbers = #tpu.dot_dimension_numbers<[1], [0], [0], [1], [0, 0, 1, 1], [], []>} : vector<64x256xf32>, vector<256x128xf32>, vector<64x128xf32> -> vector<64x128xf32>
    %18 = arith.mulf %15, %17 : vector<64x128xf32>
    %c0_10 = arith.constant 0 : index
    %c0_11 = arith.constant 0 : index
    %19 = vector.load %arg5[%c0_10, %c0_11] : memref<64x1xf32, #tpu.memory_space<vmem>>, vector<64x1xf32>
    %20 = vector.broadcast %19 : vector<64x1xf32> to vector<64x128xf32>
    %21 = arith.mulf %18, %20 : vector<64x128xf32>
    %cst_12 = arith.constant dense<0.000000e+00> : vector<128xf32>
    %22 = vector.multi_reduction <add>, %21, %cst_12 [0] : vector<64x128xf32> to vector<128xf32>
    %23 = vector.shape_cast %22 : vector<128xf32> to vector<1x128xf32>
    %c0_13 = arith.constant 0 : index
    %c0_14 = arith.constant 0 : index
    %24 = memref.load %arg6[%c0_13, %c0_14] : memref<1x1xf32, #tpu.memory_space<smem>>
    %25 = vector.broadcast %24 : f32 to vector<1x128xf32>
    %26 = arith.addf %23, %25 : vector<1x128xf32>
    %c0_15 = arith.constant 0 : index
    %c0_16 = arith.constant 0 : index
    %c0_17 = arith.constant 0 : index
    %27 = vector.load %arg7[%c0_15, %c0_16, %c0_17] : memref<1x1x128xf32, #tpu.memory_space<vmem>>, vector<1x1x128xf32>
    %28 = vector.shape_cast %27 : vector<1x1x128xf32> to vector<1x128xf32>
    %29 = vector.shape_cast %26 : vector<1x128xf32> to vector<1x1x128xf32>
    tpu.vector_store %arg7[%c0_15, %c0_16, %c0_17], %29 {strides = array<i32>} : memref<1x1x128xf32, #tpu.memory_space<vmem>>, vector<1x1x128xf32>,
    return
  }
  func.func @transform_0(%arg0: i32) -> (i32, i32, i32) {
    %c0_i32 = arith.constant 0 : i32
    %c0_i32_0 = arith.constant 0 : i32
    %c0_i32_1 = arith.constant 0 : i32
    return %arg0, %c0_i32, %c0_i32_0 : i32, i32, i32
  }
  func.func @transform_1(%arg0: i32) -> (i32, i32, i32) {
    %c0_i32 = arith.constant 0 : i32
    %c0_i32_0 = arith.constant 0 : i32
    %c0_i32_1 = arith.constant 0 : i32
    return %arg0, %c0_i32, %c0_i32_0 : i32, i32, i32
  }
  func.func @transform_2(%arg0: i32) -> (i32, i32) {
    %c0_i32 = arith.constant 0 : i32
    %c0_i32_0 = arith.constant 0 : i32
    %c0_i32_1 = arith.constant 0 : i32
    return %c0_i32, %c0_i32_0 : i32, i32
  }
  func.func @transform_3(%arg0: i32) -> (i32, i32) {
    %c0_i32 = arith.constant 0 : i32
    %c0_i32_0 = arith.constant 0 : i32
    %c0_i32_1 = arith.constant 0 : i32
    return %c0_i32, %c0_i32_0 : i32, i32
  }
  func.func @transform_4(%arg0: i32) -> (i32, i32) {
    %c0_i32 = arith.constant 0 : i32
    %c0_i32_0 = arith.constant 0 : i32
    %c0_i32_1 = arith.constant 0 : i32
    return %c0_i32, %c0_i32_0 : i32, i32
  }
  func.func @transform_5(%arg0: i32) -> (i32, i32) {
    %c0_i32 = arith.constant 0 : i32
    %c0_i32_0 = arith.constant 0 : i32
    %c0_i32_1 = arith.constant 0 : i32
    return %c0_i32, %c0_i32_0 : i32, i32
  }
  func.func @transform_6(%arg0: i32) -> (i32, i32, i32) {
    %c0_i32 = arith.constant 0 : i32
    %c0_i32_0 = arith.constant 0 : i32
    %c0_i32_1 = arith.constant 0 : i32
    return %arg0, %c0_i32, %c0_i32_0 : i32, i32, i32
  }
}

</mosaic_0001>

<llo_original>
// kernel: tpu_custom_call.1
$region0: #{tpu_custom_call.1}
  #allocation0 [shape = 'u32[]', space=smem, size = 0x4, offset = 0x4, fixed_abs, tag = 'smem constant byte address 0x4 - core index']
  #allocation1 [shape = 'u32[72,128]{1,0:T(1,128)}', space=vmem, size = 0x9000, scoped, tag = 'internal scratch']
  #allocation2 [shape = 'f32[1,1]{1,0:T(1,128)S(6)}', space=smem, size = 0x200, scoped, tag = 'scoped memory for tpu_custom_call.1']
  %s0 = inlined_call_operand.vmem [shape: s32[1,1,128], index: 0, kind: input, shape index: {}]
  %s1 = inlined_call_operand.vmem [shape: s32[1,1,128], index: 1, kind: input, shape index: {}]
  %s2 = inlined_call_operand.vmem [shape: f32[64,128], index: 2, kind: input, shape index: {}]
  %s3 = inlined_call_operand.hbm [shape: f32[64,256], index: 3, kind: input, shape index: {}]
  %s4 = inlined_call_operand.vmem [shape: f32[64,1], index: 4, kind: input, shape index: {}]
  %s5 = inlined_call_operand.<no memory space> [shape: f32[1,1], index: 5, kind: input, shape index: {}]
  %s6 = inlined_call_operand.hbm [shape: f32[1,1,128], index: 6, kind: output, shape index: {}]
  %s7 = sld [smem:[#allocation0]]
  $region38: #{tpu_custom_call.1} parent=0
    _
  %s9 = ssub.s32 1, %s7
  %s10 = scalar_select 0, %s9, %s7
  %11 = sst [smem:[#allocation2]] %s5
  $region1: #{tpu_custom_call.1} parent=0
    #allocation3 [shape = 'u8[65536]{0}', space=vmem, size = 0x10000, scoped, tag = 'input window, operand 3, single buffered']
    #allocation4 [shape = 's32[1]{0}', space=sflag, size = 0x4, scoped, tag = 'scoped memory for tpu_custom_call.1']
    #allocation5 [shape = 's32[1]{0}', space=sflag, size = 0x4, scoped, tag = 'scoped memory for tpu_custom_call.1']
    #allocation6 [shape = 'u8[512]{0}', space=vmem, size = 0x400, scoped, tag = 'output window, operand 0, single buffered']
    %12 = vsyncpa [#allocation4], 0
    %13 = vsyncpa [#allocation5], 0
    // Predicated region
    $region2: #{tpu_custom_call.1} parent=1 // pred_check
      _
    $region3: #{tpu_custom_call.1} parent=1 // pred_check_branch
      %15 = sbr.rel (0) target = $region5
    $region4: #{tpu_custom_call.1} parent=1 // pred_region
      _
    $region5: #{tpu_custom_call.1} parent=1 // pred_fallthru
      _
    // Predicated region
    $region6: #{tpu_custom_call.1} parent=1 // pred_check
      _
    $region7: #{tpu_custom_call.1} parent=1 // pred_check_branch
      %17 = sbr.rel (0) target = $region9
    $region8: #{tpu_custom_call.1} parent=1 // pred_region
      _
    $region9: #{tpu_custom_call.1} parent=1 // pred_fallthru
      _
    // Predicated region
    $region10: #{tpu_custom_call.1} parent=1 // pred_check
      _
    $region11: #{tpu_custom_call.1} parent=1 // pred_check_branch
      %19 = sbr.rel (0) target = $region13
    $region12: #{tpu_custom_call.1} parent=1 // pred_region
      _
    $region13: #{tpu_custom_call.1} parent=1 // pred_fallthru
      _
    // Predicated region
    $region14: #{tpu_custom_call.1} parent=1 // pred_check
      _
    $region15: #{tpu_custom_call.1} parent=1 // pred_check_branch
      %21 = sbr.rel (0) target = $region17
    $region16: #{tpu_custom_call.1} parent=1 // pred_region
      %23 = vsyncadd [#allocation4], 0
      %s24 = sshll.u32 %s3, 4
      %s25 = int_to_ptr.hbm [resolvable:$true] %s24
      %s26 = sshll.u32 [#allocation3], 4
      %s27 = int_to_ptr.vmem [resolvable:$true] %s26
      %32 = dma.hbm_to_vmem [thread:$0]  %s25, 2048, %s27, [#allocation4], 256, 256, 16
    $region17: #{tpu_custom_call.1} parent=1 // pred_fallthru
      _
    // Predicated region
    $region18: #{tpu_custom_call.1} parent=1 // pred_check
      _
    $region19: #{tpu_custom_call.1} parent=1 // pred_check_branch
      %34 = sbr.rel (0) target = $region21
    $region20: #{tpu_custom_call.1} parent=1 // pred_region
      _
    $region21: #{tpu_custom_call.1} parent=1 // pred_fallthru
      _
    // Predicated region
    $region22: #{tpu_custom_call.1} parent=1 // pred_check
      _
    $region23: #{tpu_custom_call.1} parent=1 // pred_check_branch
      %36 = sbr.rel (0) target = $region25
    $region24: #{tpu_custom_call.1} parent=1 // pred_region
      _
    $region25: #{tpu_custom_call.1} parent=1 // pred_fallthru
      _
    // Predicated region
    $region26: #{tpu_custom_call.1} parent=1 // pred_check
      _
    $region27: #{tpu_custom_call.1} parent=1 // pred_check_branch
      %38 = sbr.rel (0) target = $region29
    $region28: #{tpu_custom_call.1} parent=1 // pred_region
      %40 = dma.done [#allocation4], 2048
    $region29: #{tpu_custom_call.1} parent=1 // pred_fallthru
      _
    %v41 = vld [vmem:[%s0] sm:$0x1]
    %v42 = vld [vmem:[%s1] sm:$0x1]
    %v43 = vlaneseq
    %v44 = vshrl.u32 %v43, 7
    %v45 = vadd.s32 %v44, 8
    %v46 = vadd.s32 %v44, 16
    %v47 = vadd.s32 %v44, 24
    %v48 = vadd.s32 %v44, 32
    %v49 = vadd.s32 %v44, 40
    %v50 = vadd.s32 %v44, 48
    %v51 = vadd.s32 %v44, 56
    %v52 = vadd.s32 %v44, 64
    %v53 = vadd.s32 %v44, 72
    %v54 = vadd.s32 %v44, 80
    %v55 = vadd.s32 %v44, 88
    %v56 = vadd.s32 %v44, 96
    %v57 = vadd.s32 %v44, 104
    %v58 = vadd.s32 %v44, 112
    %v59 = vadd.s32 %v44, 120
    %v60 = vperm.slane %v41, 0
    %vm61 = vcmp.eq.s32.totalorder %v44, %v60
    %vm62 = vcmp.eq.s32.totalorder %v45, %v60
    %vm63 = vcmp.eq.s32.totalorder %v46, %v60
    %vm64 = vcmp.eq.s32.totalorder %v47, %v60
    %vm65 = vcmp.eq.s32.totalorder %v48, %v60
    %vm66 = vcmp.eq.s32.totalorder %v49, %v60
    %vm67 = vcmp.eq.s32.totalorder %v50, %v60
    %vm68 = vcmp.eq.s32.totalorder %v51, %v60
    %vm69 = vcmp.eq.s32.totalorder %v52, %v60
    %vm70 = vcmp.eq.s32.totalorder %v53, %v60
    %vm71 = vcmp.eq.s32.totalorder %v54, %v60
    %vm72 = vcmp.eq.s32.totalorder %v55, %v60
    %vm73 = vcmp.eq.s32.totalorder %v56, %v60
    %vm74 = vcmp.eq.s32.totalorder %v57, %v60
    %vm75 = vcmp.eq.s32.totalorder %v58, %v60
    %vm76 = vcmp.eq.s32.totalorder %v59, %v60
    %v77 = vsel %vm61, 1, 0
    %v78 = vsel %vm62, 1, 0
    %v79 = vsel %vm63, 1, 0
    %v80 = vsel %vm64, 1, 0
    %v81 = vsel %vm65, 1, 0
    %v82 = vsel %vm66, 1, 0
    %v83 = vsel %vm67, 1, 0
    %v84 = vsel %vm68, 1, 0
    %v85 = vsel %vm69, 1, 0
    %v86 = vsel %vm70, 1, 0
    %v87 = vsel %vm71, 1, 0
    %v88 = vsel %vm72, 1, 0
    %v89 = vsel %vm73, 1, 0
    %v90 = vsel %vm74, 1, 0
    %v91 = vsel %vm75, 1, 0
    %v92 = vsel %vm76, 1, 0
    %v93 = vcvt.s32.f32 %v77
    %v94 = vcvt.s32.f32 %v78
    %v95 = vcvt.s32.f32 %v79
    %v96 = vcvt.s32.f32 %v80
    %v97 = vcvt.s32.f32 %v81
    %v98 = vcvt.s32.f32 %v82
    %v99 = vcvt.s32.f32 %v83
    %v100 = vcvt.s32.f32 %v84
    %v101 = vcvt.s32.f32 %v85
    %v102 = vcvt.s32.f32 %v86
    %v103 = vcvt.s32.f32 %v87
    %v104 = vcvt.s32.f32 %v88
    %v105 = vcvt.s32.f32 %v89
    %v106 = vcvt.s32.f32 %v90
    %v107 = vcvt.s32.f32 %v91
    %v108 = vcvt.s32.f32 %v92
    %v109 = vadd.s32 %v44, 128
    %v110 = vadd.s32 %v44, 136
    %v111 = vadd.s32 %v44, 144
    %v112 = vadd.s32 %v44, 152
    %v113 = vadd.s32 %v44, 160
    %v114 = vadd.s32 %v44, 168
    %v115 = vadd.s32 %v44, 176
    %v116 = vadd.s32 %v44, 184
    %v117 = vadd.s32 %v44, 192
    %v118 = vadd.s32 %v44, 200
    %v119 = vadd.s32 %v44, 208
    %v120 = vadd.s32 %v44, 216
    %v121 = vadd.s32 %v44, 224
    %v122 = vadd.s32 %v44, 232
    %v123 = vadd.s32 %v44, 240
    %v124 = vadd.s32 %v44, 248
    %v125 = vperm.slane %v42, 0
    %vm126 = vcmp.eq.s32.totalorder %v44, %v125
    %vm127 = vcmp.eq.s32.totalorder %v45, %v125
    %vm128 = vcmp.eq.s32.totalorder %v46, %v125
    %vm129 = vcmp.eq.s32.totalorder %v47, %v125
    %vm130 = vcmp.eq.s32.totalorder %v48, %v125
    %vm131 = vcmp.eq.s32.totalorder %v49, %v125
    %vm132 = vcmp.eq.s32.totalorder %v50, %v125
    %vm133 = vcmp.eq.s32.totalorder %v51, %v125
    %vm134 = vcmp.eq.s32.totalorder %v52, %v125
    %vm135 = vcmp.eq.s32.totalorder %v53, %v125
    %vm136 = vcmp.eq.s32.totalorder %v54, %v125
    %vm137 = vcmp.eq.s32.totalorder %v55, %v125
    %vm138 = vcmp.eq.s32.totalorder %v56, %v125
    %vm139 = vcmp.eq.s32.totalorder %v57, %v125
    %vm140 = vcmp.eq.s32.totalorder %v58, %v125
    %vm141 = vcmp.eq.s32.totalorder %v59, %v125
    %vm142 = vcmp.eq.s32.totalorder %v109, %v125
    %vm143 = vcmp.eq.s32.totalorder %v110, %v125
    %vm144 = vcmp.eq.s32.totalorder %v111, %v125
    %vm145 = vcmp.eq.s32.totalorder %v112, %v125
    %vm146 = vcmp.eq.s32.totalorder %v113, %v125
    %vm147 = vcmp.eq.s32.totalorder %v114, %v125
    %vm148 = vcmp.eq.s32.totalorder %v115, %v125
    %vm149 = vcmp.eq.s32.totalorder %v116, %v125
    %vm150 = vcmp.eq.s32.totalorder %v117, %v125
    %vm151 = vcmp.eq.s32.totalorder %v118, %v125
    %vm152 = vcmp.eq.s32.totalorder %v119, %v125
    %vm153 = vcmp.eq.s32.totalorder %v120, %v125
    %vm154 = vcmp.eq.s32.totalorder %v121, %v125
    %vm155 = vcmp.eq.s32.totalorder %v122, %v125
    %vm156 = vcmp.eq.s32.totalorder %v123, %v125
    %vm157 = vcmp.eq.s32.totalorder %v124, %v125
    %v158 = vsel %vm126, 1, 0
    %v159 = vsel %vm127, 1, 0
    %v160 = vsel %vm128, 1, 0
    %v161 = vsel %vm129, 1, 0
    %v162 = vsel %vm130, 1, 0
    %v163 = vsel %vm131, 1, 0
    %v164 = vsel %vm132, 1, 0
    %v165 = vsel %vm133, 1, 0
    %v166 = vsel %vm134, 1, 0
    %v167 = vsel %vm135, 1, 0
    %v168 = vsel %vm136, 1, 0
    %v169 = vsel %vm137, 1, 0
    %v170 = vsel %vm138, 1, 0
    %v171 = vsel %vm139, 1, 0
    %v172 = vsel %vm140, 1, 0
    %v173 = vsel %vm141, 1, 0
    %v174 = vsel %vm142, 1, 0
    %v175 = vsel %vm143, 1, 0
    %v176 = vsel %vm144, 1, 0
    %v177 = vsel %vm145, 1, 0
    %v178 = vsel %vm146, 1, 0
    %v179 = vsel %vm147, 1, 0
    %v180 = vsel %vm148, 1, 0
    %v181 = vsel %vm149, 1, 0
    %v182 = vsel %vm150, 1, 0
    %v183 = vsel %vm151, 1, 0
    %v184 = vsel %vm152, 1, 0
    %v185 = vsel %vm153, 1, 0
    %v186 = vsel %vm154, 1, 0
    %v187 = vsel %vm155, 1, 0
    %v188 = vsel %vm156, 1, 0
    %v189 = vsel %vm157, 1, 0
    %v190 = vcvt.s32.f32 %v158
    %v191 = vcvt.s32.f32 %v159
    %v192 = vcvt.s32.f32 %v160
    %v193 = vcvt.s32.f32 %v161
    %v194 = vcvt.s32.f32 %v162
    %v195 = vcvt.s32.f32 %v163
    %v196 = vcvt.s32.f32 %v164
    %v197 = vcvt.s32.f32 %v165
    %v198 = vcvt.s32.f32 %v166
    %v199 = vcvt.s32.f32 %v167
    %v200 = vcvt.s32.f32 %v168
    %v201 = vcvt.s32.f32 %v169
    %v202 = vcvt.s32.f32 %v170
    %v203 = vcvt.s32.f32 %v171
    %v204 = vcvt.s32.f32 %v172
    %v205 = vcvt.s32.f32 %v173
    %v206 = vcvt.s32.f32 %v174
    %v207 = vcvt.s32.f32 %v175
    %v208 = vcvt.s32.f32 %v176
    %v209 = vcvt.s32.f32 %v177
    %v210 = vcvt.s32.f32 %v178
    %v211 = vcvt.s32.f32 %v179
    %v212 = vcvt.s32.f32 %v180
    %v213 = vcvt.s32.f32 %v181
    %v214 = vcvt.s32.f32 %v182
    %v215 = vcvt.s32.f32 %v183
    %v216 = vcvt.s32.f32 %v184
    %v217 = vcvt.s32.f32 %v185
    %v218 = vcvt.s32.f32 %v186
    %v219 = vcvt.s32.f32 %v187
    %v220 = vcvt.s32.f32 %v188
    %v221 = vcvt.s32.f32 %v189
    %v222 = vld [vmem:[%s2] sm:$0xff]
    %v223 = vld [vmem:[%s2 + $0x8] sm:$0xff]
    %v224 = vld [vmem:[%s2 + $0x10] sm:$0xff]
    %v225 = vld [vmem:[%s2 + $0x18] sm:$0xff]
    %v226 = vld [vmem:[%s2 + $0x20] sm:$0xff]
    %v227 = vld [vmem:[%s2 + $0x28] sm:$0xff]
    %v228 = vld [vmem:[%s2 + $0x30] sm:$0xff]
    %v229 = vld [vmem:[%s2 + $0x38] sm:$0xff]
    %230 = vmatpush.msra.mxu0 %v108
    %231 = vmatpush.msra.mxu0 %v107
    %232 = vmatpush.msra.mxu0 %v106
    %233 = vmatpush.msra.mxu0 %v105
    %234 = vmatpush.msra.mxu0 %v104
    %235 = vmatpush.msra.mxu0 %v103
    %236 = vmatpush.msra.mxu0 %v102
    %237 = vmatpush.msra.mxu0 %v101
    %238 = vmatpush.msra.mxu0 %v100
    %239 = vmatpush.msra.mxu0 %v99
    %240 = vmatpush.msra.mxu0 %v98
    %241 = vmatpush.msra.mxu0 %v97
    %242 = vmatpush.msra.mxu0 %v96
    %243 = vmatpush.msra.mxu0 %v95
    %244 = vmatpush.msra.mxu0 %v94
    %245 = vmatpush.msra.mxu0 %v93
    %246 = vmatmul.f32.gmra.mxu0 %v222
    %v247 = vpop.f32.mrf.mxu0
    %v248 = vadd.f32 0.0, %v247
    %249 = vmatmul.f32.gmra.mxu0 %v223
    %v250 = vpop.f32.mrf.mxu0
    %v251 = vadd.f32 0.0, %v250
    %252 = vmatmul.f32.gmra.mxu0 %v224
    %v253 = vpop.f32.mrf.mxu0
    %v254 = vadd.f32 0.0, %v253
    %255 = vmatmul.f32.gmra.mxu0 %v225
    %v256 = vpop.f32.mrf.mxu0
    %v257 = vadd.f32 0.0, %v256
    %258 = vmatmul.f32.gmra.mxu0 %v226
    %v259 = vpop.f32.mrf.mxu0
    %v260 = vadd.f32 0.0, %v259
    %261 = vmatmul.f32.gmra.mxu0 %v227
    %v262 = vpop.f32.mrf.mxu0
    %v263 = vadd.f32 0.0, %v262
    %264 = vmatmul.f32.gmra.mxu0 %v228
    %v265 = vpop.f32.mrf.mxu0
    %v266 = vadd.f32 0.0, %v265
    %267 = vmatmul.f32.gmra.mxu0 %v229
    %v268 = vpop.f32.mrf.mxu0
    %v269 = vadd.f32 0.0, %v268
    %270 = vdwg.mxu0
    %v271 = vld [vmem:[#allocation3] sm:$0xff]
    %v272 = vld [vmem:[#allocation3 + $0x8] sm:$0xff]
    %v273 = vld [vmem:[#allocation3 + $0x10] sm:$0xff]
    %v274 = vld [vmem:[#allocation3 + $0x18] sm:$0xff]
    %v275 = vld [vmem:[#allocation3 + $0x20] sm:$0xff]
    %v276 = vld [vmem:[#allocation3 + $0x28] sm:$0xff]
    %v277 = vld [vmem:[#allocation3 + $0x30] sm:$0xff]
    %v278 = vld [vmem:[#allocation3 + $0x38] sm:$0xff]
    %v279 = vld [vmem:[#allocation3 + $0x40] sm:$0xff]
    %v280 = vld [vmem:[#allocation3 + $0x48] sm:$0xff]
    %v281 = vld [vmem:[#allocation3 + $0x50] sm:$0xff]
    %v282 = vld [vmem:[#allocation3 + $0x58] sm:$0xff]
    %v283 = vld [vmem:[#allocation3 + $0x60] sm:$0xff]
    %v284 = vld [vmem:[#allocation3 + $0x68] sm:$0xff]
    %v285 = vld [vmem:[#allocation3 + $0x70] sm:$0xff]
    %v286 = vld [vmem:[#allocation3 + $0x78] sm:$0xff]
    %287 = vmatpush.msra.mxu0 %v205
    %288 = vmatpush.msra.mxu0 %v204
    %289 = vmatpush.msra.mxu0 %v203
    %290 = vmatpush.msra.mxu0 %v202
    %291 = vmatpush.msra.mxu0 %v201
    %292 = vmatpush.msra.mxu0 %v200
    %293 = vmatpush.msra.mxu0 %v199
    %294 = vmatpush.msra.mxu0 %v198
    %295 = vmatpush.msra.mxu0 %v197
    %296 = vmatpush.msra.mxu0 %v196
    %297 = vmatpush.msra.mxu0 %v195
    %298 = vmatpush.msra.mxu0 %v194
    %299 = vmatpush.msra.mxu0 %v193
    %300 = vmatpush.msra.mxu0 %v192
    %301 = vmatpush.msra.mxu0 %v191
    %302 = vmatpush.msra.mxu0 %v190
    %303 = vmatmul.f32.gmra.mxu0 %v271
    %v304 = vpop.f32.mrf.mxu0
    %v305 = vadd.f32 0.0, %v304
    %306 = vmatmul.f32.gmra.mxu0 %v273
    %v307 = vpop.f32.mrf.mxu0
    %v308 = vadd.f32 0.0, %v307
    %309 = vmatmul.f32.gmra.mxu0 %v275
    %v310 = vpop.f32.mrf.mxu0
    %v311 = vadd.f32 0.0, %v310
    %312 = vmatmul.f32.gmra.mxu0 %v277
    %v313 = vpop.f32.mrf.mxu0
    %v314 = vadd.f32 0.0, %v313
    %315 = vmatmul.f32.gmra.mxu0 %v279
    %v316 = vpop.f32.mrf.mxu0
    %v317 = vadd.f32 0.0, %v316
    %318 = vmatmul.f32.gmra.mxu0 %v281
    %v319 = vpop.f32.mrf.mxu0
    %v320 = vadd.f32 0.0, %v319
    %321 = vmatmul.f32.gmra.mxu0 %v283
    %v322 = vpop.f32.mrf.mxu0
    %v323 = vadd.f32 0.0, %v322
    %324 = vmatmul.f32.gmra.mxu0 %v285
    %v325 = vpop.f32.mrf.mxu0
    %v326 = vadd.f32 0.0, %v325
    %327 = vdwg.mxu0
    %328 = vmatpush.msra.mxu0 %v221
    %329 = vmatpush.msra.mxu0 %v220
    %330 = vmatpush.msra.mxu0 %v219
    %331 = vmatpush.msra.mxu0 %v218
    %332 = vmatpush.msra.mxu0 %v217
    %333 = vmatpush.msra.mxu0 %v216
    %334 = vmatpush.msra.mxu0 %v215
    %335 = vmatpush.msra.mxu0 %v214
    %336 = vmatpush.msra.mxu0 %v213
    %337 = vmatpush.msra.mxu0 %v212
    %338 = vmatpush.msra.mxu0 %v211
    %339 = vmatpush.msra.mxu0 %v210
    %340 = vmatpush.msra.mxu0 %v209
    %341 = vmatpush.msra.mxu0 %v208
    %342 = vmatpush.msra.mxu0 %v207
    %343 = vmatpush.msra.mxu0 %v206
    %344 = vmatmul.f32.gmra.mxu0 %v272
    %v345 = vpop.f32.mrf.mxu0
    %v346 = vadd.f32 %v305, %v345
    %347 = vmatmul.f32.gmra.mxu0 %v274
    %v348 = vpop.f32.mrf.mxu0
    %v349 = vadd.f32 %v308, %v348
    %350 = vmatmul.f32.gmra.mxu0 %v276
    %v351 = vpop.f32.mrf.mxu0
    %v352 = vadd.f32 %v311, %v351
    %353 = vmatmul.f32.gmra.mxu0 %v278
    %v354 = vpop.f32.mrf.mxu0
    %v355 = vadd.f32 %v314, %v354
    %356 = vmatmul.f32.gmra.mxu0 %v280
    %v357 = vpop.f32.mrf.mxu0
    %v358 = vadd.f32 %v317, %v357
    %359 = vmatmul.f32.gmra.mxu0 %v282
    %v360 = vpop.f32.mrf.mxu0
    %v361 = vadd.f32 %v320, %v360
    %362 = vmatmul.f32.gmra.mxu0 %v284
    %v363 = vpop.f32.mrf.mxu0
    %v364 = vadd.f32 %v323, %v363
    %365 = vmatmul.f32.gmra.mxu0 %v286
    %v366 = vpop.f32.mrf.mxu0
    %v367 = vadd.f32 %v326, %v366
    %368 = vdwg.mxu0
    %v369 = vmul.f32 %v248, %v346
    %v370 = vmul.f32 %v251, %v349
    %v371 = vmul.f32 %v254, %v352
    %v372 = vmul.f32 %v257, %v355
    %v373 = vmul.f32 %v260, %v358
    %v374 = vmul.f32 %v263, %v361
    %v375 = vmul.f32 %v266, %v364
    %v376 = vmul.f32 %v269, %v367
    %v377 = vld [vmem:[%s4] sm:$0xff]
    %v378 = vld [vmem:[%s4 + $0x8] sm:$0xff]
    %v379 = vld [vmem:[%s4 + $0x10] sm:$0xff]
    %v380 = vld [vmem:[%s4 + $0x18] sm:$0xff]
    %v381 = vld [vmem:[%s4 + $0x20] sm:$0xff]
    %v382 = vld [vmem:[%s4 + $0x28] sm:$0xff]
    %v383 = vld [vmem:[%s4 + $0x30] sm:$0xff]
    %v384 = vld [vmem:[%s4 + $0x38] sm:$0xff]
    %386 = vset.pattern.permute.xlu0 0
    %387 = vperm.xlu0 %386, %v377
    %v388 = vpop.permute.xlu0 %387
    %391 = vset.pattern.permute.xlu0 0
    %392 = vperm.xlu0 %391, %v378
    %v393 = vpop.permute.xlu0 %392
    %396 = vset.pattern.permute.xlu0 0
    %397 = vperm.xlu0 %396, %v379
    %v398 = vpop.permute.xlu0 %397
    %401 = vset.pattern.permute.xlu0 0
    %402 = vperm.xlu0 %401, %v380
    %v403 = vpop.permute.xlu0 %402
    %406 = vset.pattern.permute.xlu0 0
    %407 = vperm.xlu0 %406, %v381
    %v408 = vpop.permute.xlu0 %407
    %411 = vset.pattern.permute.xlu0 0
    %412 = vperm.xlu0 %411, %v382
    %v413 = vpop.permute.xlu0 %412
    %416 = vset.pattern.permute.xlu0 0
    %417 = vperm.xlu0 %416, %v383
    %v418 = vpop.permute.xlu0 %417
    %421 = vset.pattern.permute.xlu0 0
    %422 = vperm.xlu0 %421, %v384
    %v423 = vpop.permute.xlu0 %422
    %v425 = vmul.f32 %v369, %v388
    %v426 = vmul.f32 %v370, %v393
    %v427 = vmul.f32 %v371, %v398
    %v428 = vmul.f32 %v372, %v403
    %v429 = vmul.f32 %v373, %v408
    %v430 = vmul.f32 %v374, %v413
    %v431 = vmul.f32 %v375, %v418
    %v432 = vmul.f32 %v376, %v423
    %v433 = vadd.f32 %v425, %v426
    %v434 = vadd.f32 %v433, %v427
    %v435 = vadd.f32 %v434, %v428
    %v436 = vadd.f32 %v435, %v429
    %v437 = vadd.f32 %v436, %v430
    %v438 = vadd.f32 %v437, %v431
    %v439 = vadd.f32 %v438, %v432
    %v440 = vrot.slane %v439, 4
    %v441 = vadd.f32 %v439, %v440
    %v442 = vrot.slane %v441, 2
    %v443 = vadd.f32 %v441, %v442
    %v444 = vrot.slane %v443, 1
    %v445 = vadd.f32 %v443, %v444
    %s446 = sld [smem:[#allocation2]]
    %v447 = vstv %s446
    %v448 = vadd.f32 %v445, %v447
    %449 = vst [vmem:[#allocation6] sm:$0x1] %v448
    // Predicated region
    $region30: #{tpu_custom_call.1} parent=1 // pred_check
      _
    $region31: #{tpu_custom_call.1} parent=1 // pred_check_branch
      %451 = sbr.rel (0) target = $region33
    $region32: #{tpu_custom_call.1} parent=1 // pred_region
      %453 = vsyncadd [#allocation5], 0
      %s455 = sshll.u32 [#allocation6], 4
      %s456 = int_to_ptr.vmem [resolvable:$true] %s455
      %s457 = sshll.u32 %s6, 4
      %s458 = int_to_ptr.hbm [resolvable:$true] %s457
      %460 = dma.vmem_to_hbm [thread:$0]  %s456, 16, %s458, [#allocation5]
    $region33: #{tpu_custom_call.1} parent=1 // pred_fallthru
      _
    // Predicated region
    $region34: #{tpu_custom_call.1} parent=1 // pred_check
      _
    $region35: #{tpu_custom_call.1} parent=1 // pred_check_branch
      %462 = sbr.rel (0) target = $region37
    $region36: #{tpu_custom_call.1} parent=1 // pred_region
      %464 = dma.done [#allocation5], 16
    $region37: #{tpu_custom_call.1} parent=1 // pred_fallthru
      _
    %465 = vsyncpa [#allocation4], 1
    %466 = vsyncpa [#allocation5], 1

</llo_original>
